<compile_context>
chip_gen: v7x
topology: tpu7x:2x2x1
jax: 0.10.0
libtpu: 0.0.40
codegen_flags: <defaults>
</compile_context>

<pallas_src>
import jax
import jax.numpy as jnp
from jax import lax
from jax.experimental import pallas as pl
from jax.experimental.pallas import tpu as pltpu


def fused_kernel(x1_ref, x2_ref, inp_ref, v0_ref, out_ref):
    # Two MXU pushes (both trivially small; MXU has huge slack here) + one VPU add.
    acc = jnp.dot(
        x1_ref[...], x2_ref[...],
        preferred_element_type=jnp.float32,
        precision=lax.Precision.HIGHEST,
    )
    acc = acc + jnp.dot(
        inp_ref[...], inp_ref[...],
        preferred_element_type=jnp.float32,
        precision=lax.Precision.HIGHEST,
    )
    out_ref[...] = (acc + v0_ref[...]).astype(out_ref.dtype)


@jax.jit
def model_forward(x1, x2, inp, v0):
    M, K = x1.shape
    _, N = x2.shape

    vmem = pl.BlockSpec(memory_space=pltpu.MemorySpace.VMEM)

    # Advisory cost hint: two MxKxN matmuls + elementwise adds; ~5 tiny arrays.
    cost = pl.CostEstimate(
        flops=2 * (2 * M * K * N) + 2 * M * N,
        transcendentals=0,
        bytes_accessed=4 * (x1.size + x2.size + inp.size + v0.size + M * N),
    )

    return pl.pallas_call(
        fused_kernel,
        out_shape=jax.ShapeDtypeStruct((M, N), jnp.float32),
        grid=(),
        in_specs=[vmem, vmem, vmem, vmem],
        out_specs=vmem,
        cost_estimate=cost,
    )(x1, x2, inp, v0)


if __name__ == "__main__":
    key = jax.random.PRNGKey(0)
    k1, k2, k3, k4 = jax.random.split(key, 4)
    # Shapes from the original module spec: all (3, 3) float32.
    x1 = jax.random.normal(k1, (3, 3), dtype=jnp.float32)
    x2 = jax.random.normal(k2, (3, 3), dtype=jnp.float32)
    inp = jax.random.normal(k3, (3, 3), dtype=jnp.float32)
    v0 = jax.random.normal(k4, (3, 3), dtype=jnp.float32)

    out = model_forward(x1, x2, inp, v0)
    jax.block_until_ready(out)

    # Correctness check against pure-JAX reference (matches PyTorch forward).
    ref = (
        jnp.dot(x1, x2, precision=lax.Precision.HIGHEST)
        + v0
        + jnp.dot(inp, inp, precision=lax.Precision.HIGHEST)
    )
    assert jnp.allclose(out, ref, atol=1e-5, rtol=1e-5), "mismatch vs reference"
    print("KERNEL_OK")
</pallas_src>

<mosaic_0001>
module attributes {stable_mosaic.version = 11 : i64} {
  func.func @fused_kernel(%arg0: memref<3x3xf32, #tpu.memory_space<vmem>>, %arg1: memref<3x3xf32, #tpu.memory_space<vmem>>, %arg2: memref<3x3xf32, #tpu.memory_space<vmem>>, %arg3: memref<3x3xf32, #tpu.memory_space<vmem>>, %arg4: memref<3x3xf32, #tpu.memory_space<vmem>>) attributes {dimension_semantics = [], scalar_prefetch = 0 : i64, scratch_operands = 0 : i64, tpu.core_type = #tpu.core_type<tc>} {
    %c0 = arith.constant 0 : index
    %c0_0 = arith.constant 0 : index
    %0 = vector.load %arg0[%c0, %c0_0] : memref<3x3xf32, #tpu.memory_space<vmem>>, vector<3x3xf32>
    %c0_1 = arith.constant 0 : index
    %c0_2 = arith.constant 0 : index
    %1 = vector.load %arg1[%c0_1, %c0_2] : memref<3x3xf32, #tpu.memory_space<vmem>>, vector<3x3xf32>
    %cst = arith.constant dense<0.000000e+00> : vector<3x3xf32>
    %2 = tpu.matmul %0, %1, %cst {dimension_numbers = #tpu.dot_dimension_numbers<[1], [0], [0], [1], [0, 0, 1, 1], [], []>, precision = #tpu.contract_precision<fp32>} : vector<3x3xf32>, vector<3x3xf32>, vector<3x3xf32> -> vector<3x3xf32>
    %c0_3 = arith.constant 0 : index
    %c0_4 = arith.constant 0 : index
    %3 = vector.load %arg2[%c0_3, %c0_4] : memref<3x3xf32, #tpu.memory_space<vmem>>, vector<3x3xf32>
    %c0_5 = arith.constant 0 : index
    %c0_6 = arith.constant 0 : index
    %4 = vector.load %arg2[%c0_5, %c0_6] : memref<3x3xf32, #tpu.memory_space<vmem>>, vector<3x3xf32>
    %cst_7 = arith.constant dense<0.000000e+00> : vector<3x3xf32>
    %5 = tpu.matmul %3, %4, %cst_7 {dimension_numbers = #tpu.dot_dimension_numbers<[1], [0], [0], [1], [0, 0, 1, 1], [], []>, precision = #tpu.contract_precision<fp32>} : vector<3x3xf32>, vector<3x3xf32>, vector<3x3xf32> -> vector<3x3xf32>
    %6 = arith.addf %2, %5 : vector<3x3xf32>
    %c0_8 = arith.constant 0 : index
    %c0_9 = arith.constant 0 : index
    %7 = vector.load %arg3[%c0_8, %c0_9] : memref<3x3xf32, #tpu.memory_space<vmem>>, vector<3x3xf32>
    %8 = arith.addf %6, %7 : vector<3x3xf32>
    %c0_10 = arith.constant 0 : index
    %c0_11 = arith.constant 0 : index
    %9 = vector.load %arg4[%c0_10, %c0_11] : memref<3x3xf32, #tpu.memory_space<vmem>>, vector<3x3xf32>
    tpu.vector_store %arg4[%c0_10, %c0_11], %8 {strides = array<i32>} : memref<3x3xf32, #tpu.memory_space<vmem>>, vector<3x3xf32>,
    return
  }
}

</mosaic_0001>

<llo_original>
// kernel: model_forward.1
$region0: #{model_forward.1}
  #allocation0 [shape = 'u32[]', space=smem, size = 0x4, offset = 0x4, fixed_abs, tag = 'smem constant byte address 0x4 - core index']
  #allocation1 [shape = 'u32[144,128]{1,0:T(1,128)}', space=vmem, size = 0x12000, scoped, tag = 'internal scratch']
  %s0 = inlined_call_operand.hbm [shape: f32[3,3], index: 0, kind: input, shape index: {}]
  %s1 = inlined_call_operand.hbm [shape: f32[3,3], index: 1, kind: input, shape index: {}]
  %s2 = inlined_call_operand.vmem [shape: f32[3,3], index: 2, kind: input, shape index: {}]
  %s3 = inlined_call_operand.vmem [shape: f32[3,3], index: 3, kind: input, shape index: {}]
  %s4 = inlined_call_operand.hbm [shape: f32[3,3], index: 4, kind: output, shape index: {}]
  %s5 = sld [smem:[#allocation0]]
  $region34: #{model_forward.1} parent=0
    _
  %s7 = ssub.s32 1, %s5
  %s8 = scalar_select 0, %s7, %s5
  $region1: #{model_forward.1} parent=0
    #allocation2 [shape = 'u8[2048]{0}', space=vmem, size = 0x800, scoped, tag = 'input window, operand 0, single buffered']
    #allocation3 [shape = 's32[1]{0}', space=sflag, size = 0x4, scoped, tag = 'scoped memory for model_forward.1']
    #allocation4 [shape = 's32[1]{0}', space=sflag, size = 0x4, scoped, tag = 'scoped memory for model_forward.1']
    #allocation5 [shape = 'u8[2048]{0}', space=vmem, size = 0x800, scoped, tag = 'input window, operand 1, single buffered']
    #allocation6 [shape = 's32[1]{0}', space=sflag, size = 0x4, scoped, tag = 'scoped memory for model_forward.1']
    #allocation7 [shape = 'u8[2048]{0}', space=vmem, size = 0x800, scoped, tag = 'output window, operand 0, single buffered']
    %9 = vsyncpa [#allocation3], 0
    %10 = vsyncpa [#allocation6], 0
    %11 = vsyncpa [#allocation4], 0
    // Predicated region
    $region2: #{model_forward.1} parent=1 // pred_check
      _
    $region3: #{model_forward.1} parent=1 // pred_check_branch
      %13 = sbr.rel (0) target = $region5
    $region4: #{model_forward.1} parent=1 // pred_region
      %s15 = ssub.s32 64, 64
      %16 = vsyncadd [#allocation3], %s15
      %s18 = sshll.u32 [#allocation2], 4
      %s19 = int_to_ptr.vmem [resolvable:$true] %s18
      %21 = dma.hbm_to_vmem [thread:$0]  %s0, 64, %s19, [#allocation3]
    $region5: #{model_forward.1} parent=1 // pred_fallthru
      _
    // Predicated region
    $region6: #{model_forward.1} parent=1 // pred_check
      _
    $region7: #{model_forward.1} parent=1 // pred_check_branch
      %23 = sbr.rel (0) target = $region9
    $region8: #{model_forward.1} parent=1 // pred_region
      %s25 = ssub.s32 64, 64
      %26 = vsyncadd [#allocation6], %s25
      %s28 = sshll.u32 [#allocation5], 4
      %s29 = int_to_ptr.vmem [resolvable:$true] %s28
      %31 = dma.hbm_to_vmem [thread:$0]  %s1, 64, %s29, [#allocation6]
    $region9: #{model_forward.1} parent=1 // pred_fallthru
      _
    // Predicated region
    $region10: #{model_forward.1} parent=1 // pred_check
      _
    $region11: #{model_forward.1} parent=1 // pred_check_branch
      %33 = sbr.rel (0) target = $region13
    $region12: #{model_forward.1} parent=1 // pred_region
      _
    $region13: #{model_forward.1} parent=1 // pred_fallthru
      _
    // Predicated region
    $region14: #{model_forward.1} parent=1 // pred_check
      _
    $region15: #{model_forward.1} parent=1 // pred_check_branch
      %35 = sbr.rel (0) target = $region17
    $region16: #{model_forward.1} parent=1 // pred_region
      _
    $region17: #{model_forward.1} parent=1 // pred_fallthru
      _
    // Predicated region
    $region18: #{model_forward.1} parent=1 // pred_check
      _
    $region19: #{model_forward.1} parent=1 // pred_check_branch
      %37 = sbr.rel (0) target = $region21
    $region20: #{model_forward.1} parent=1 // pred_region
      %38 = dma.done [#allocation3], 64
    $region21: #{model_forward.1} parent=1 // pred_fallthru
      _
    // Predicated region
    $region22: #{model_forward.1} parent=1 // pred_check
      _
    $region23: #{model_forward.1} parent=1 // pred_check_branch
      %40 = sbr.rel (0) target = $region25
    $region24: #{model_forward.1} parent=1 // pred_region
      %41 = dma.done [#allocation6], 64
    $region25: #{model_forward.1} parent=1 // pred_fallthru
      _
    %v42 = vld [vmem:[#allocation2] sm:$0x7]
    %v43 = vld [vmem:[#allocation5] sm:$0x7]
    %v44 = vld [vmem:[%s2] sm:$0x7]
    %vm45 = vcmask 23552
    %v47 = vsel %vm45, %v44, 0
    %vm49 = vcmask 1042432
    %v50 = vsel %vm49, %v44, 0
    %52 = vmatprep.subr.mxu0 0.0
    %v53 = vand.u32 %v50, 4294901760
    %54 = vmatpush1.msra.mxu0 %v53
    %55 = vmatprep.subr.mxu0 0.0
    %56 = vmatpush1.msra.mxu0 0.0
    %57 = vmatprep.subr.mxu0 0.0
    %58 = vmatpush1.msra.mxu0 0.0
    %59 = vmatprep.subr.mxu0 0.0
    %60 = vmatpush1.msra.mxu0 0.0
    %61 = vmatprep.subr.mxu0 0.0
    %62 = vmatpush1.msra.mxu0 0.0
    %63 = vmatprep.subr.mxu0 0.0
    %64 = vmatpush1.msra.mxu0 0.0
    %65 = vmatprep.subr.mxu0 0.0
    %66 = vmatpush1.msra.mxu0 0.0
    %67 = vmatprep.subr.mxu0 0.0
    %68 = vmatpush1.msra.mxu0 0.0
    %69 = vmatprep.subr.mxu0 0.0
    %70 = vmatpush1.msra.mxu0 0.0
    %71 = vmatprep.subr.mxu0 0.0
    %72 = vmatpush1.msra.mxu0 0.0
    %73 = vmatprep.subr.mxu0 0.0
    %74 = vmatpush1.msra.mxu0 0.0
    %75 = vmatprep.subr.mxu0 0.0
    %76 = vmatpush1.msra.mxu0 0.0
    %77 = vmatprep.subr.mxu0 0.0
    %78 = vmatpush1.msra.mxu0 0.0
    %79 = vmatprep.subr.mxu0 0.0
    %80 = vmatpush1.msra.mxu0 0.0
    %81 = vmatprep.subr.mxu0 0.0
    %82 = vmatpush1.msra.mxu0 0.0
    %83 = vmatprep.subr.mxu0 0.0
    %84 = vmatpush1.msra.mxu0 0.0
    %85 = vmatprep.subr.mxu0 0.0
    %86 = vmatpush1.msra.mxu0 0.0
    %87 = vmatprep.subr.mxu0 0.0
    %88 = vmatpush1.msra.mxu0 0.0
    %89 = vmatprep.subr.mxu0 0.0
    %90 = vmatpush1.msra.mxu0 0.0
    %91 = vmatprep.subr.mxu0 0.0
    %92 = vmatpush1.msra.mxu0 0.0
    %93 = vmatprep.subr.mxu0 0.0
    %94 = vmatpush1.msra.mxu0 0.0
    %95 = vmatprep.subr.mxu0 0.0
    %96 = vmatpush1.msra.mxu0 0.0
    %97 = vmatprep.subr.mxu0 0.0
    %98 = vmatpush1.msra.mxu0 0.0
    %99 = vmatprep.subr.mxu0 0.0
    %100 = vmatpush1.msra.mxu0 0.0
    %101 = vmatprep.subr.mxu0 0.0
    %102 = vmatpush1.msra.mxu0 0.0
    %103 = vmatprep.subr.mxu0 0.0
    %104 = vmatpush1.msra.mxu0 0.0
    %105 = vmatprep.subr.mxu0 0.0
    %106 = vmatpush1.msra.mxu0 0.0
    %107 = vmatprep.subr.mxu0 0.0
    %108 = vmatpush1.msra.mxu0 0.0
    %109 = vmatprep.subr.mxu0 0.0
    %110 = vmatpush1.msra.mxu0 0.0
    %111 = vmatprep.subr.mxu0 0.0
    %112 = vmatpush1.msra.mxu0 0.0
    %113 = vmatprep.subr.mxu0 0.0
    %114 = vmatpush1.msra.mxu0 0.0
    %115 = vmatprep.subr.mxu0 0.0
    %116 = vmatpush1.msra.mxu0 0.0
    %117 = vmatprep.mubr.f32.mxu0 0.0
    %v118 = vand.u32 %v47, 4294901760
    %v119 = vsub.f32 %v47, %v118
    %v120 = vand.u32 %v119, 4294901760
    %v121 = vsub.f32 %v119, %v120
    %v122 = vand.u32 %v121, 4294901760
    %123 = vmatmul.mubr.f32.gmra.mrb[0].mxu0 %v122
    %v124 = vpop.f32.mrb[0].mxu0
    %v125 = vadd.f32 0.0, %v124
    %v126 = vpop.f32.mrb[0].mxu0
    %127 = vdwg.mxu0
    %128 = vmatprep.subr.mxu0 0.0
    %v129 = vand.u32 %v50, 4294901760
    %v130 = vsub.f32 %v50, %v129
    %v131 = vand.u32 %v130, 4294901760
    %v132 = vsub.f32 %v130, %v131
    %v133 = vand.u32 %v132, 4294901760
    %134 = vmatpush1.msra.mxu0 %v133
    %135 = vmatprep.subr.mxu0 0.0
    %136 = vmatpush1.msra.mxu0 0.0
    %137 = vmatprep.subr.mxu0 0.0
    %138 = vmatpush1.msra.mxu0 0.0
    %139 = vmatprep.subr.mxu0 0.0
    %140 = vmatpush1.msra.mxu0 0.0
    %141 = vmatprep.subr.mxu0 0.0
    %142 = vmatpush1.msra.mxu0 0.0
    %143 = vmatprep.subr.mxu0 0.0
    %144 = vmatpush1.msra.mxu0 0.0
    %145 = vmatprep.subr.mxu0 0.0
    %146 = vmatpush1.msra.mxu0 0.0
    %147 = vmatprep.subr.mxu0 0.0
    %148 = vmatpush1.msra.mxu0 0.0
    %149 = vmatprep.subr.mxu0 0.0
    %150 = vmatpush1.msra.mxu0 0.0
    %151 = vmatprep.subr.mxu0 0.0
    %152 = vmatpush1.msra.mxu0 0.0
    %153 = vmatprep.subr.mxu0 0.0
    %154 = vmatpush1.msra.mxu0 0.0
    %155 = vmatprep.subr.mxu0 0.0
    %156 = vmatpush1.msra.mxu0 0.0
    %157 = vmatprep.subr.mxu0 0.0
    %158 = vmatpush1.msra.mxu0 0.0
    %159 = vmatprep.subr.mxu0 0.0
    %160 = vmatpush1.msra.mxu0 0.0
    %161 = vmatprep.subr.mxu0 0.0
    %162 = vmatpush1.msra.mxu0 0.0
    %163 = vmatprep.subr.mxu0 0.0
    %164 = vmatpush1.msra.mxu0 0.0
    %165 = vmatprep.subr.mxu0 0.0
    %166 = vmatpush1.msra.mxu0 0.0
    %167 = vmatprep.subr.mxu0 0.0
    %168 = vmatpush1.msra.mxu0 0.0
    %169 = vmatprep.subr.mxu0 0.0
    %170 = vmatpush1.msra.mxu0 0.0
    %171 = vmatprep.subr.mxu0 0.0
    %172 = vmatpush1.msra.mxu0 0.0
    %173 = vmatprep.subr.mxu0 0.0
    %174 = vmatpush1.msra.mxu0 0.0
    %175 = vmatprep.subr.mxu0 0.0
    %176 = vmatpush1.msra.mxu0 0.0
    %177 = vmatprep.subr.mxu0 0.0
    %178 = vmatpush1.msra.mxu0 0.0
    %179 = vmatprep.subr.mxu0 0.0
    %180 = vmatpush1.msra.mxu0 0.0
    %181 = vmatprep.subr.mxu0 0.0
    %182 = vmatpush1.msra.mxu0 0.0
    %183 = vmatprep.subr.mxu0 0.0
    %184 = vmatpush1.msra.mxu0 0.0
    %185 = vmatprep.subr.mxu0 0.0
    %186 = vmatpush1.msra.mxu0 0.0
    %187 = vmatprep.subr.mxu0 0.0
    %188 = vmatpush1.msra.mxu0 0.0
    %189 = vmatprep.subr.mxu0 0.0
    %190 = vmatpush1.msra.mxu0 0.0
    %191 = vmatprep.subr.mxu0 0.0
    %192 = vmatpush1.msra.mxu0 0.0
    %193 = vmatprep.subr.mxu0 0.0
    %194 = vmatpush1.msra.mxu0 0.0
    %195 = vmatprep.subr.mxu0 0.0
    %196 = vmatpush1.msra.mxu0 0.0
    %197 = vmatprep.mubr.f32.mxu0 0.0
    %v198 = vand.u32 %v47, 4294901760
    %199 = vmatmul.mubr.f32.gmra.mrb[0].mxu0 %v198
    %v200 = vpop.f32.mrb[0].mxu0
    %v201 = vadd.f32 %v125, %v200
    %v202 = vpop.f32.mrb[0].mxu0
    %203 = vdwg.mxu0
    %204 = vmatprep.subr.mxu0 0.0
    %v205 = vand.u32 %v50, 4294901760
    %v206 = vsub.f32 %v50, %v205
    %207 = vmatpush1.msra.mxu0 %v206
    %208 = vmatprep.subr.mxu0 0.0
    %209 = vmatpush1.msra.mxu0 0.0
    %210 = vmatprep.subr.mxu0 0.0
    %211 = vmatpush1.msra.mxu0 0.0
    %212 = vmatprep.subr.mxu0 0.0
    %213 = vmatpush1.msra.mxu0 0.0
    %214 = vmatprep.subr.mxu0 0.0
    %215 = vmatpush1.msra.mxu0 0.0
    %216 = vmatprep.subr.mxu0 0.0
    %217 = vmatpush1.msra.mxu0 0.0
    %218 = vmatprep.subr.mxu0 0.0
    %219 = vmatpush1.msra.mxu0 0.0
    %220 = vmatprep.subr.mxu0 0.0
    %221 = vmatpush1.msra.mxu0 0.0
    %222 = vmatprep.subr.mxu0 0.0
    %223 = vmatpush1.msra.mxu0 0.0
    %224 = vmatprep.subr.mxu0 0.0
    %225 = vmatpush1.msra.mxu0 0.0
    %226 = vmatprep.subr.mxu0 0.0
    %227 = vmatpush1.msra.mxu0 0.0
    %228 = vmatprep.subr.mxu0 0.0
    %229 = vmatpush1.msra.mxu0 0.0
    %230 = vmatprep.subr.mxu0 0.0
    %231 = vmatpush1.msra.mxu0 0.0
    %232 = vmatprep.subr.mxu0 0.0
    %233 = vmatpush1.msra.mxu0 0.0
    %234 = vmatprep.subr.mxu0 0.0
    %235 = vmatpush1.msra.mxu0 0.0
    %236 = vmatprep.subr.mxu0 0.0
    %237 = vmatpush1.msra.mxu0 0.0
    %238 = vmatprep.subr.mxu0 0.0
    %239 = vmatpush1.msra.mxu0 0.0
    %240 = vmatprep.subr.mxu0 0.0
    %241 = vmatpush1.msra.mxu0 0.0
    %242 = vmatprep.subr.mxu0 0.0
    %243 = vmatpush1.msra.mxu0 0.0
    %244 = vmatprep.subr.mxu0 0.0
    %245 = vmatpush1.msra.mxu0 0.0
    %246 = vmatprep.subr.mxu0 0.0
    %247 = vmatpush1.msra.mxu0 0.0
    %248 = vmatprep.subr.mxu0 0.0
    %249 = vmatpush1.msra.mxu0 0.0
    %250 = vmatprep.subr.mxu0 0.0
    %251 = vmatpush1.msra.mxu0 0.0
    %252 = vmatprep.subr.mxu0 0.0
    %253 = vmatpush1.msra.mxu0 0.0
    %254 = vmatprep.subr.mxu0 0.0
    %255 = vmatpush1.msra.mxu0 0.0
    %256 = vmatprep.subr.mxu0 0.0
    %257 = vmatpush1.msra.mxu0 0.0
    %258 = vmatprep.subr.mxu0 0.0
    %259 = vmatpush1.msra.mxu0 0.0
    %260 = vmatprep.subr.mxu0 0.0
    %261 = vmatpush1.msra.mxu0 0.0
    %262 = vmatprep.subr.mxu0 0.0
    %263 = vmatpush1.msra.mxu0 0.0
    %264 = vmatprep.subr.mxu0 0.0
    %265 = vmatpush1.msra.mxu0 0.0
    %266 = vmatprep.subr.mxu0 0.0
    %267 = vmatpush1.msra.mxu0 0.0
    %268 = vmatprep.subr.mxu0 0.0
    %269 = vmatpush1.msra.mxu0 0.0
    %270 = vmatprep.mubr.f32.mxu0 0.0
    %v271 = vand.u32 %v47, 4294901760
    %v272 = vsub.f32 %v47, %v271
    %273 = vmatmul.mubr.f32.gmra.mrb[0].mxu0 %v272
    %v274 = vpop.f32.mrb[0].mxu0
    %v275 = vadd.f32 %v201, %v274
    %v276 = vpop.f32.mrb[0].mxu0
    %277 = vdwg.mxu0
    %278 = vmatprep.subr.mxu0 0.0
    %v279 = vand.u32 %v50, 4294901760
    %280 = vmatpush1.msra.mxu0 %v279
    %281 = vmatprep.subr.mxu0 0.0
    %282 = vmatpush1.msra.mxu0 0.0
    %283 = vmatprep.subr.mxu0 0.0
    %284 = vmatpush1.msra.mxu0 0.0
    %285 = vmatprep.subr.mxu0 0.0
    %286 = vmatpush1.msra.mxu0 0.0
    %287 = vmatprep.subr.mxu0 0.0
    %288 = vmatpush1.msra.mxu0 0.0
    %289 = vmatprep.subr.mxu0 0.0
    %290 = vmatpush1.msra.mxu0 0.0
    %291 = vmatprep.subr.mxu0 0.0
    %292 = vmatpush1.msra.mxu0 0.0
    %293 = vmatprep.subr.mxu0 0.0
    %294 = vmatpush1.msra.mxu0 0.0
    %295 = vmatprep.subr.mxu0 0.0
    %296 = vmatpush1.msra.mxu0 0.0
    %297 = vmatprep.subr.mxu0 0.0
    %298 = vmatpush1.msra.mxu0 0.0
    %299 = vmatprep.subr.mxu0 0.0
    %300 = vmatpush1.msra.mxu0 0.0
    %301 = vmatprep.subr.mxu0 0.0
    %302 = vmatpush1.msra.mxu0 0.0
    %303 = vmatprep.subr.mxu0 0.0
    %304 = vmatpush1.msra.mxu0 0.0
    %305 = vmatprep.subr.mxu0 0.0
    %306 = vmatpush1.msra.mxu0 0.0
    %307 = vmatprep.subr.mxu0 0.0
    %308 = vmatpush1.msra.mxu0 0.0
    %309 = vmatprep.subr.mxu0 0.0
    %310 = vmatpush1.msra.mxu0 0.0
    %311 = vmatprep.subr.mxu0 0.0
    %312 = vmatpush1.msra.mxu0 0.0
    %313 = vmatprep.subr.mxu0 0.0
    %314 = vmatpush1.msra.mxu0 0.0
    %315 = vmatprep.subr.mxu0 0.0
    %316 = vmatpush1.msra.mxu0 0.0
    %317 = vmatprep.subr.mxu0 0.0
    %318 = vmatpush1.msra.mxu0 0.0
    %319 = vmatprep.subr.mxu0 0.0
    %320 = vmatpush1.msra.mxu0 0.0
    %321 = vmatprep.subr.mxu0 0.0
    %322 = vmatpush1.msra.mxu0 0.0
    %323 = vmatprep.subr.mxu0 0.0
    %324 = vmatpush1.msra.mxu0 0.0
    %325 = vmatprep.subr.mxu0 0.0
    %326 = vmatpush1.msra.mxu0 0.0
    %327 = vmatprep.subr.mxu0 0.0
    %328 = vmatpush1.msra.mxu0 0.0
    %329 = vmatprep.subr.mxu0 0.0
    %330 = vmatpush1.msra.mxu0 0.0
    %331 = vmatprep.subr.mxu0 0.0
    %332 = vmatpush1.msra.mxu0 0.0
    %333 = vmatprep.subr.mxu0 0.0
    %334 = vmatpush1.msra.mxu0 0.0
    %335 = vmatprep.subr.mxu0 0.0
    %336 = vmatpush1.msra.mxu0 0.0
    %337 = vmatprep.subr.mxu0 0.0
    %338 = vmatpush1.msra.mxu0 0.0
    %339 = vmatprep.subr.mxu0 0.0
    %340 = vmatpush1.msra.mxu0 0.0
    %341 = vmatprep.subr.mxu0 0.0
    %342 = vmatpush1.msra.mxu0 0.0
    %343 = vmatprep.mubr.f32.mxu0 0.0
    %v344 = vand.u32 %v47, 4294901760
    %v345 = vsub.f32 %v47, %v344
    %v346 = vand.u32 %v345, 4294901760
    %347 = vmatmul.mubr.f32.gmra.mrb[0].mxu0 %v346
    %v348 = vpop.f32.mrb[0].mxu0
    %v349 = vadd.f32 %v275, %v348
    %v350 = vpop.f32.mrb[0].mxu0
    %351 = vdwg.mxu0
    %352 = vmatprep.subr.mxu0 0.0
    %v353 = vand.u32 %v50, 4294901760
    %v354 = vsub.f32 %v50, %v353
    %v355 = vand.u32 %v354, 4294901760
    %356 = vmatpush1.msra.mxu0 %v355
    %357 = vmatprep.subr.mxu0 0.0
    %358 = vmatpush1.msra.mxu0 0.0
    %359 = vmatprep.subr.mxu0 0.0
    %360 = vmatpush1.msra.mxu0 0.0
    %361 = vmatprep.subr.mxu0 0.0
    %362 = vmatpush1.msra.mxu0 0.0
    %363 = vmatprep.subr.mxu0 0.0
    %364 = vmatpush1.msra.mxu0 0.0
    %365 = vmatprep.subr.mxu0 0.0
    %366 = vmatpush1.msra.mxu0 0.0
    %367 = vmatprep.subr.mxu0 0.0
    %368 = vmatpush1.msra.mxu0 0.0
    %369 = vmatprep.subr.mxu0 0.0
    %370 = vmatpush1.msra.mxu0 0.0
    %371 = vmatprep.subr.mxu0 0.0
    %372 = vmatpush1.msra.mxu0 0.0
    %373 = vmatprep.subr.mxu0 0.0
    %374 = vmatpush1.msra.mxu0 0.0
    %375 = vmatprep.subr.mxu0 0.0
    %376 = vmatpush1.msra.mxu0 0.0
    %377 = vmatprep.subr.mxu0 0.0
    %378 = vmatpush1.msra.mxu0 0.0
    %379 = vmatprep.subr.mxu0 0.0
    %380 = vmatpush1.msra.mxu0 0.0
    %381 = vmatprep.subr.mxu0 0.0
    %382 = vmatpush1.msra.mxu0 0.0
    %383 = vmatprep.subr.mxu0 0.0
    %384 = vmatpush1.msra.mxu0 0.0
    %385 = vmatprep.subr.mxu0 0.0
    %386 = vmatpush1.msra.mxu0 0.0
    %387 = vmatprep.subr.mxu0 0.0
    %388 = vmatpush1.msra.mxu0 0.0
    %389 = vmatprep.subr.mxu0 0.0
    %390 = vmatpush1.msra.mxu0 0.0
    %391 = vmatprep.subr.mxu0 0.0
    %392 = vmatpush1.msra.mxu0 0.0
    %393 = vmatprep.subr.mxu0 0.0
    %394 = vmatpush1.msra.mxu0 0.0
    %395 = vmatprep.subr.mxu0 0.0
    %396 = vmatpush1.msra.mxu0 0.0
    %397 = vmatprep.subr.mxu0 0.0
    %398 = vmatpush1.msra.mxu0 0.0
    %399 = vmatprep.subr.mxu0 0.0
    %400 = vmatpush1.msra.mxu0 0.0
    %401 = vmatprep.subr.mxu0 0.0
    %402 = vmatpush1.msra.mxu0 0.0
    %403 = vmatprep.subr.mxu0 0.0
    %404 = vmatpush1.msra.mxu0 0.0
    %405 = vmatprep.subr.mxu0 0.0
    %406 = vmatpush1.msra.mxu0 0.0
    %407 = vmatprep.subr.mxu0 0.0
    %408 = vmatpush1.msra.mxu0 0.0
    %409 = vmatprep.subr.mxu0 0.0
    %410 = vmatpush1.msra.mxu0 0.0
    %411 = vmatprep.subr.mxu0 0.0
    %412 = vmatpush1.msra.mxu0 0.0
    %413 = vmatprep.subr.mxu0 0.0
    %414 = vmatpush1.msra.mxu0 0.0
    %415 = vmatprep.subr.mxu0 0.0
    %416 = vmatpush1.msra.mxu0 0.0
    %417 = vmatprep.subr.mxu0 0.0
    %418 = vmatpush1.msra.mxu0 0.0
    %419 = vmatprep.mubr.f32.mxu0 0.0
    %v420 = vand.u32 %v47, 4294901760
    %421 = vmatmul.mubr.f32.gmra.mrb[0].mxu0 %v420
    %v422 = vpop.f32.mrb[0].mxu0
    %v423 = vadd.f32 %v349, %v422
    %v424 = vpop.f32.mrb[0].mxu0
    %425 = vdwg.mxu0
    %426 = vmatprep.subr.mxu0 0.0
    %v427 = vand.u32 %v50, 4294901760
    %428 = vmatpush1.msra.mxu0 %v427
    %429 = vmatprep.subr.mxu0 0.0
    %430 = vmatpush1.msra.mxu0 0.0
    %431 = vmatprep.subr.mxu0 0.0
    %432 = vmatpush1.msra.mxu0 0.0
    %433 = vmatprep.subr.mxu0 0.0
    %434 = vmatpush1.msra.mxu0 0.0
    %435 = vmatprep.subr.mxu0 0.0
    %436 = vmatpush1.msra.mxu0 0.0
    %437 = vmatprep.subr.mxu0 0.0
    %438 = vmatpush1.msra.mxu0 0.0
    %439 = vmatprep.subr.mxu0 0.0
    %440 = vmatpush1.msra.mxu0 0.0
    %441 = vmatprep.subr.mxu0 0.0
    %442 = vmatpush1.msra.mxu0 0.0
    %443 = vmatprep.subr.mxu0 0.0
    %444 = vmatpush1.msra.mxu0 0.0
    %445 = vmatprep.subr.mxu0 0.0
    %446 = vmatpush1.msra.mxu0 0.0
    %447 = vmatprep.subr.mxu0 0.0
    %448 = vmatpush1.msra.mxu0 0.0
    %449 = vmatprep.subr.mxu0 0.0
    %450 = vmatpush1.msra.mxu0 0.0
    %451 = vmatprep.subr.mxu0 0.0
    %452 = vmatpush1.msra.mxu0 0.0
    %453 = vmatprep.subr.mxu0 0.0
    %454 = vmatpush1.msra.mxu0 0.0
    %455 = vmatprep.subr.mxu0 0.0
    %456 = vmatpush1.msra.mxu0 0.0
    %457 = vmatprep.subr.mxu0 0.0
    %458 = vmatpush1.msra.mxu0 0.0
    %459 = vmatprep.subr.mxu0 0.0
    %460 = vmatpush1.msra.mxu0 0.0
    %461 = vmatprep.subr.mxu0 0.0
    %462 = vmatpush1.msra.mxu0 0.0
    %463 = vmatprep.subr.mxu0 0.0
    %464 = vmatpush1.msra.mxu0 0.0
    %465 = vmatprep.subr.mxu0 0.0
    %466 = vmatpush1.msra.mxu0 0.0
    %467 = vmatprep.subr.mxu0 0.0
    %468 = vmatpush1.msra.mxu0 0.0
    %469 = vmatprep.subr.mxu0 0.0
    %470 = vmatpush1.msra.mxu0 0.0
    %471 = vmatprep.subr.mxu0 0.0
    %472 = vmatpush1.msra.mxu0 0.0
    %473 = vmatprep.subr.mxu0 0.0
    %474 = vmatpush1.msra.mxu0 0.0
    %475 = vmatprep.subr.mxu0 0.0
    %476 = vmatpush1.msra.mxu0 0.0
    %477 = vmatprep.subr.mxu0 0.0
    %478 = vmatpush1.msra.mxu0 0.0
    %479 = vmatprep.subr.mxu0 0.0
    %480 = vmatpush1.msra.mxu0 0.0
    %481 = vmatprep.subr.mxu0 0.0
    %482 = vmatpush1.msra.mxu0 0.0
    %483 = vmatprep.subr.mxu0 0.0
    %484 = vmatpush1.msra.mxu0 0.0
    %485 = vmatprep.subr.mxu0 0.0
    %486 = vmatpush1.msra.mxu0 0.0
    %487 = vmatprep.subr.mxu0 0.0
    %488 = vmatpush1.msra.mxu0 0.0
    %489 = vmatprep.subr.mxu0 0.0
    %490 = vmatpush1.msra.mxu0 0.0
    %491 = vmatprep.mubr.f32.mxu0 0.0
    %v492 = vand.u32 %v47, 4294901760
    %493 = vmatmul.mubr.f32.gmra.mrb[0].mxu0 %v492
    %v494 = vpop.f32.mrb[0].mxu0
    %v495 = vadd.f32 %v423, %v494
    %v496 = vpop.f32.mrb[0].mxu0
    %497 = vdwg.mxu0
    %v499 = vsel %vm45, %v42, 0
    %v502 = vsel %vm49, %v43, 0
    %504 = vmatprep.subr.mxu0 0.0
    %v505 = vand.u32 %v502, 4294901760
    %506 = vmatpush1.msra.mxu0 %v505
    %507 = vmatprep.subr.mxu0 0.0
    %508 = vmatpush1.msra.mxu0 0.0
    %509 = vmatprep.subr.mxu0 0.0
    %510 = vmatpush1.msra.mxu0 0.0
    %511 = vmatprep.subr.mxu0 0.0
    %512 = vmatpush1.msra.mxu0 0.0
    %513 = vmatprep.subr.mxu0 0.0
    %514 = vmatpush1.msra.mxu0 0.0
    %515 = vmatprep.subr.mxu0 0.0
    %516 = vmatpush1.msra.mxu0 0.0
    %517 = vmatprep.subr.mxu0 0.0
    %518 = vmatpush1.msra.mxu0 0.0
    %519 = vmatprep.subr.mxu0 0.0
    %520 = vmatpush1.msra.mxu0 0.0
    %521 = vmatprep.subr.mxu0 0.0
    %522 = vmatpush1.msra.mxu0 0.0
    %523 = vmatprep.subr.mxu0 0.0
    %524 = vmatpush1.msra.mxu0 0.0
    %525 = vmatprep.subr.mxu0 0.0
    %526 = vmatpush1.msra.mxu0 0.0
    %527 = vmatprep.subr.mxu0 0.0
    %528 = vmatpush1.msra.mxu0 0.0
    %529 = vmatprep.subr.mxu0 0.0
    %530 = vmatpush1.msra.mxu0 0.0
    %531 = vmatprep.subr.mxu0 0.0
    %532 = vmatpush1.msra.mxu0 0.0
    %533 = vmatprep.subr.mxu0 0.0
    %534 = vmatpush1.msra.mxu0 0.0
    %535 = vmatprep.subr.mxu0 0.0
    %536 = vmatpush1.msra.mxu0 0.0
    %537 = vmatprep.subr.mxu0 0.0
    %538 = vmatpush1.msra.mxu0 0.0
    %539 = vmatprep.subr.mxu0 0.0
    %540 = vmatpush1.msra.mxu0 0.0
    %541 = vmatprep.subr.mxu0 0.0
    %542 = vmatpush1.msra.mxu0 0.0
    %543 = vmatprep.subr.mxu0 0.0
    %544 = vmatpush1.msra.mxu0 0.0
    %545 = vmatprep.subr.mxu0 0.0
    %546 = vmatpush1.msra.mxu0 0.0
    %547 = vmatprep.subr.mxu0 0.0
    %548 = vmatpush1.msra.mxu0 0.0
    %549 = vmatprep.subr.mxu0 0.0
    %550 = vmatpush1.msra.mxu0 0.0
    %551 = vmatprep.subr.mxu0 0.0
    %552 = vmatpush1.msra.mxu0 0.0
    %553 = vmatprep.subr.mxu0 0.0
    %554 = vmatpush1.msra.mxu0 0.0
    %555 = vmatprep.subr.mxu0 0.0
    %556 = vmatpush1.msra.mxu0 0.0
    %557 = vmatprep.subr.mxu0 0.0
    %558 = vmatpush1.msra.mxu0 0.0
    %559 = vmatprep.subr.mxu0 0.0
    %560 = vmatpush1.msra.mxu0 0.0
    %561 = vmatprep.subr.mxu0 0.0
    %562 = vmatpush1.msra.mxu0 0.0
    %563 = vmatprep.subr.mxu0 0.0
    %564 = vmatpush1.msra.mxu0 0.0
    %565 = vmatprep.subr.mxu0 0.0
    %566 = vmatpush1.msra.mxu0 0.0
    %567 = vmatprep.subr.mxu0 0.0
    %568 = vmatpush1.msra.mxu0 0.0
    %569 = vmatprep.mubr.f32.mxu0 0.0
    %v570 = vand.u32 %v499, 4294901760
    %v571 = vsub.f32 %v499, %v570
    %v572 = vand.u32 %v571, 4294901760
    %v573 = vsub.f32 %v571, %v572
    %v574 = vand.u32 %v573, 4294901760
    %575 = vmatmul.mubr.f32.gmra.mrb[0].mxu0 %v574
    %v576 = vpop.f32.mrb[0].mxu0
    %v577 = vadd.f32 %v495, %v576
    %v578 = vpop.f32.mrb[0].mxu0
    %579 = vdwg.mxu0
    %580 = vmatprep.subr.mxu0 0.0
    %v581 = vand.u32 %v502, 4294901760
    %v582 = vsub.f32 %v502, %v581
    %v583 = vand.u32 %v582, 4294901760
    %v584 = vsub.f32 %v582, %v583
    %v585 = vand.u32 %v584, 4294901760
    %586 = vmatpush1.msra.mxu0 %v585
    %587 = vmatprep.subr.mxu0 0.0
    %588 = vmatpush1.msra.mxu0 0.0
    %589 = vmatprep.subr.mxu0 0.0
    %590 = vmatpush1.msra.mxu0 0.0
    %591 = vmatprep.subr.mxu0 0.0
    %592 = vmatpush1.msra.mxu0 0.0
    %593 = vmatprep.subr.mxu0 0.0
    %594 = vmatpush1.msra.mxu0 0.0
    %595 = vmatprep.subr.mxu0 0.0
    %596 = vmatpush1.msra.mxu0 0.0
    %597 = vmatprep.subr.mxu0 0.0
    %598 = vmatpush1.msra.mxu0 0.0
    %599 = vmatprep.subr.mxu0 0.0
    %600 = vmatpush1.msra.mxu0 0.0
    %601 = vmatprep.subr.mxu0 0.0
    %602 = vmatpush1.msra.mxu0 0.0
    %603 = vmatprep.subr.mxu0 0.0
    %604 = vmatpush1.msra.mxu0 0.0
    %605 = vmatprep.subr.mxu0 0.0
    %606 = vmatpush1.msra.mxu0 0.0
    %607 = vmatprep.subr.mxu0 0.0
    %608 = vmatpush1.msra.mxu0 0.0
    %609 = vmatprep.subr.mxu0 0.0
    %610 = vmatpush1.msra.mxu0 0.0
    %611 = vmatprep.subr.mxu0 0.0
    %612 = vmatpush1.msra.mxu0 0.0
    %613 = vmatprep.subr.mxu0 0.0
    %614 = vmatpush1.msra.mxu0 0.0
    %615 = vmatprep.subr.mxu0 0.0
    %616 = vmatpush1.msra.mxu0 0.0
    %617 = vmatprep.subr.mxu0 0.0
    %618 = vmatpush1.msra.mxu0 0.0
    %619 = vmatprep.subr.mxu0 0.0
    %620 = vmatpush1.msra.mxu0 0.0
    %621 = vmatprep.subr.mxu0 0.0
    %622 = vmatpush1.msra.mxu0 0.0
    %623 = vmatprep.subr.mxu0 0.0
    %624 = vmatpush1.msra.mxu0 0.0
    %625 = vmatprep.subr.mxu0 0.0
    %626 = vmatpush1.msra.mxu0 0.0
    %627 = vmatprep.subr.mxu0 0.0
    %628 = vmatpush1.msra.mxu0 0.0
    %629 = vmatprep.subr.mxu0 0.0
    %630 = vmatpush1.msra.mxu0 0.0
    %631 = vmatprep.subr.mxu0 0.0
    %632 = vmatpush1.msra.mxu0 0.0
    %633 = vmatprep.subr.mxu0 0.0
    %634 = vmatpush1.msra.mxu0 0.0
    %635 = vmatprep.subr.mxu0 0.0
    %636 = vmatpush1.msra.mxu0 0.0
    %637 = vmatprep.subr.mxu0 0.0
    %638 = vmatpush1.msra.mxu0 0.0
    %639 = vmatprep.subr.mxu0 0.0
    %640 = vmatpush1.msra.mxu0 0.0
    %641 = vmatprep.subr.mxu0 0.0
    %642 = vmatpush1.msra.mxu0 0.0
    %643 = vmatprep.subr.mxu0 0.0
    %644 = vmatpush1.msra.mxu0 0.0
    %645 = vmatprep.subr.mxu0 0.0
    %646 = vmatpush1.msra.mxu0 0.0
    %647 = vmatprep.subr.mxu0 0.0
    %648 = vmatpush1.msra.mxu0 0.0
    %649 = vmatprep.mubr.f32.mxu0 0.0
    %v650 = vand.u32 %v499, 4294901760
    %651 = vmatmul.mubr.f32.gmra.mrb[0].mxu0 %v650
    %v652 = vpop.f32.mrb[0].mxu0
    %v653 = vadd.f32 %v577, %v652
    %v654 = vpop.f32.mrb[0].mxu0
    %655 = vdwg.mxu0
    %656 = vmatprep.subr.mxu0 0.0
    %v657 = vand.u32 %v502, 4294901760
    %v658 = vsub.f32 %v502, %v657
    %659 = vmatpush1.msra.mxu0 %v658
    %660 = vmatprep.subr.mxu0 0.0
    %661 = vmatpush1.msra.mxu0 0.0
    %662 = vmatprep.subr.mxu0 0.0
    %663 = vmatpush1.msra.mxu0 0.0
    %664 = vmatprep.subr.mxu0 0.0
    %665 = vmatpush1.msra.mxu0 0.0
    %666 = vmatprep.subr.mxu0 0.0
    %667 = vmatpush1.msra.mxu0 0.0
    %668 = vmatprep.subr.mxu0 0.0
    %669 = vmatpush1.msra.mxu0 0.0
    %670 = vmatprep.subr.mxu0 0.0
    %671 = vmatpush1.msra.mxu0 0.0
    %672 = vmatprep.subr.mxu0 0.0
    %673 = vmatpush1.msra.mxu0 0.0
    %674 = vmatprep.subr.mxu0 0.0
    %675 = vmatpush1.msra.mxu0 0.0
    %676 = vmatprep.subr.mxu0 0.0
    %677 = vmatpush1.msra.mxu0 0.0
    %678 = vmatprep.subr.mxu0 0.0
    %679 = vmatpush1.msra.mxu0 0.0
    %680 = vmatprep.subr.mxu0 0.0
    %681 = vmatpush1.msra.mxu0 0.0
    %682 = vmatprep.subr.mxu0 0.0
    %683 = vmatpush1.msra.mxu0 0.0
    %684 = vmatprep.subr.mxu0 0.0
    %685 = vmatpush1.msra.mxu0 0.0
    %686 = vmatprep.subr.mxu0 0.0
    %687 = vmatpush1.msra.mxu0 0.0
    %688 = vmatprep.subr.mxu0 0.0
    %689 = vmatpush1.msra.mxu0 0.0
    %690 = vmatprep.subr.mxu0 0.0
    %691 = vmatpush1.msra.mxu0 0.0
    %692 = vmatprep.subr.mxu0 0.0
    %693 = vmatpush1.msra.mxu0 0.0
    %694 = vmatprep.subr.mxu0 0.0
    %695 = vmatpush1.msra.mxu0 0.0
    %696 = vmatprep.subr.mxu0 0.0
    %697 = vmatpush1.msra.mxu0 0.0
    %698 = vmatprep.subr.mxu0 0.0
    %699 = vmatpush1.msra.mxu0 0.0
    %700 = vmatprep.subr.mxu0 0.0
    %701 = vmatpush1.msra.mxu0 0.0
    %702 = vmatprep.subr.mxu0 0.0
    %703 = vmatpush1.msra.mxu0 0.0
    %704 = vmatprep.subr.mxu0 0.0
    %705 = vmatpush1.msra.mxu0 0.0
    %706 = vmatprep.subr.mxu0 0.0
    %707 = vmatpush1.msra.mxu0 0.0
    %708 = vmatprep.subr.mxu0 0.0
    %709 = vmatpush1.msra.mxu0 0.0
    %710 = vmatprep.subr.mxu0 0.0
    %711 = vmatpush1.msra.mxu0 0.0
    %712 = vmatprep.subr.mxu0 0.0
    %713 = vmatpush1.msra.mxu0 0.0
    %714 = vmatprep.subr.mxu0 0.0
    %715 = vmatpush1.msra.mxu0 0.0
    %716 = vmatprep.subr.mxu0 0.0
    %717 = vmatpush1.msra.mxu0 0.0
    %718 = vmatprep.subr.mxu0 0.0
    %719 = vmatpush1.msra.mxu0 0.0
    %720 = vmatprep.subr.mxu0 0.0
    %721 = vmatpush1.msra.mxu0 0.0
    %722 = vmatprep.mubr.f32.mxu0 0.0
    %v723 = vand.u32 %v499, 4294901760
    %v724 = vsub.f32 %v499, %v723
    %725 = vmatmul.mubr.f32.gmra.mrb[0].mxu0 %v724
    %v726 = vpop.f32.mrb[0].mxu0
    %v727 = vadd.f32 %v653, %v726
    %v728 = vpop.f32.mrb[0].mxu0
    %729 = vdwg.mxu0
    %730 = vmatprep.subr.mxu0 0.0
    %v731 = vand.u32 %v502, 4294901760
    %732 = vmatpush1.msra.mxu0 %v731
    %733 = vmatprep.subr.mxu0 0.0
    %734 = vmatpush1.msra.mxu0 0.0
    %735 = vmatprep.subr.mxu0 0.0
    %736 = vmatpush1.msra.mxu0 0.0
    %737 = vmatprep.subr.mxu0 0.0
    %738 = vmatpush1.msra.mxu0 0.0
    %739 = vmatprep.subr.mxu0 0.0
    %740 = vmatpush1.msra.mxu0 0.0
    %741 = vmatprep.subr.mxu0 0.0
    %742 = vmatpush1.msra.mxu0 0.0
    %743 = vmatprep.subr.mxu0 0.0
    %744 = vmatpush1.msra.mxu0 0.0
    %745 = vmatprep.subr.mxu0 0.0
    %746 = vmatpush1.msra.mxu0 0.0
    %747 = vmatprep.subr.mxu0 0.0
    %748 = vmatpush1.msra.mxu0 0.0
    %749 = vmatprep.subr.mxu0 0.0
    %750 = vmatpush1.msra.mxu0 0.0
    %751 = vmatprep.subr.mxu0 0.0
    %752 = vmatpush1.msra.mxu0 0.0
    %753 = vmatprep.subr.mxu0 0.0
    %754 = vmatpush1.msra.mxu0 0.0
    %755 = vmatprep.subr.mxu0 0.0
    %756 = vmatpush1.msra.mxu0 0.0
    %757 = vmatprep.subr.mxu0 0.0
    %758 = vmatpush1.msra.mxu0 0.0
    %759 = vmatprep.subr.mxu0 0.0
    %760 = vmatpush1.msra.mxu0 0.0
    %761 = vmatprep.subr.mxu0 0.0
    %762 = vmatpush1.msra.mxu0 0.0
    %763 = vmatprep.subr.mxu0 0.0
    %764 = vmatpush1.msra.mxu0 0.0
    %765 = vmatprep.subr.mxu0 0.0
    %766 = vmatpush1.msra.mxu0 0.0
    %767 = vmatprep.subr.mxu0 0.0
    %768 = vmatpush1.msra.mxu0 0.0
    %769 = vmatprep.subr.mxu0 0.0
    %770 = vmatpush1.msra.mxu0 0.0
    %771 = vmatprep.subr.mxu0 0.0
    %772 = vmatpush1.msra.mxu0 0.0
    %773 = vmatprep.subr.mxu0 0.0
    %774 = vmatpush1.msra.mxu0 0.0
    %775 = vmatprep.subr.mxu0 0.0
    %776 = vmatpush1.msra.mxu0 0.0
    %777 = vmatprep.subr.mxu0 0.0
    %778 = vmatpush1.msra.mxu0 0.0
    %779 = vmatprep.subr.mxu0 0.0
    %780 = vmatpush1.msra.mxu0 0.0
    %781 = vmatprep.subr.mxu0 0.0
    %782 = vmatpush1.msra.mxu0 0.0
    %783 = vmatprep.subr.mxu0 0.0
    %784 = vmatpush1.msra.mxu0 0.0
    %785 = vmatprep.subr.mxu0 0.0
    %786 = vmatpush1.msra.mxu0 0.0
    %787 = vmatprep.subr.mxu0 0.0
    %788 = vmatpush1.msra.mxu0 0.0
    %789 = vmatprep.subr.mxu0 0.0
    %790 = vmatpush1.msra.mxu0 0.0
    %791 = vmatprep.subr.mxu0 0.0
    %792 = vmatpush1.msra.mxu0 0.0
    %793 = vmatprep.subr.mxu0 0.0
    %794 = vmatpush1.msra.mxu0 0.0
    %795 = vmatprep.mubr.f32.mxu0 0.0
    %v796 = vand.u32 %v499, 4294901760
    %v797 = vsub.f32 %v499, %v796
    %v798 = vand.u32 %v797, 4294901760
    %799 = vmatmul.mubr.f32.gmra.mrb[0].mxu0 %v798
    %v800 = vpop.f32.mrb[0].mxu0
    %v801 = vadd.f32 %v727, %v800
    %v802 = vpop.f32.mrb[0].mxu0
    %803 = vdwg.mxu0
    %804 = vmatprep.subr.mxu0 0.0
    %v805 = vand.u32 %v502, 4294901760
    %v806 = vsub.f32 %v502, %v805
    %v807 = vand.u32 %v806, 4294901760
    %808 = vmatpush1.msra.mxu0 %v807
    %809 = vmatprep.subr.mxu0 0.0
    %810 = vmatpush1.msra.mxu0 0.0
    %811 = vmatprep.subr.mxu0 0.0
    %812 = vmatpush1.msra.mxu0 0.0
    %813 = vmatprep.subr.mxu0 0.0
    %814 = vmatpush1.msra.mxu0 0.0
    %815 = vmatprep.subr.mxu0 0.0
    %816 = vmatpush1.msra.mxu0 0.0
    %817 = vmatprep.subr.mxu0 0.0
    %818 = vmatpush1.msra.mxu0 0.0
    %819 = vmatprep.subr.mxu0 0.0
    %820 = vmatpush1.msra.mxu0 0.0
    %821 = vmatprep.subr.mxu0 0.0
    %822 = vmatpush1.msra.mxu0 0.0
    %823 = vmatprep.subr.mxu0 0.0
    %824 = vmatpush1.msra.mxu0 0.0
    %825 = vmatprep.subr.mxu0 0.0
    %826 = vmatpush1.msra.mxu0 0.0
    %827 = vmatprep.subr.mxu0 0.0
    %828 = vmatpush1.msra.mxu0 0.0
    %829 = vmatprep.subr.mxu0 0.0
    %830 = vmatpush1.msra.mxu0 0.0
    %831 = vmatprep.subr.mxu0 0.0
    %832 = vmatpush1.msra.mxu0 0.0
    %833 = vmatprep.subr.mxu0 0.0
    %834 = vmatpush1.msra.mxu0 0.0
    %835 = vmatprep.subr.mxu0 0.0
    %836 = vmatpush1.msra.mxu0 0.0
    %837 = vmatprep.subr.mxu0 0.0
    %838 = vmatpush1.msra.mxu0 0.0
    %839 = vmatprep.subr.mxu0 0.0
    %840 = vmatpush1.msra.mxu0 0.0
    %841 = vmatprep.subr.mxu0 0.0
    %842 = vmatpush1.msra.mxu0 0.0
    %843 = vmatprep.subr.mxu0 0.0
    %844 = vmatpush1.msra.mxu0 0.0
    %845 = vmatprep.subr.mxu0 0.0
    %846 = vmatpush1.msra.mxu0 0.0
    %847 = vmatprep.subr.mxu0 0.0
    %848 = vmatpush1.msra.mxu0 0.0
    %849 = vmatprep.subr.mxu0 0.0
    %850 = vmatpush1.msra.mxu0 0.0
    %851 = vmatprep.subr.mxu0 0.0
    %852 = vmatpush1.msra.mxu0 0.0
    %853 = vmatprep.subr.mxu0 0.0
    %854 = vmatpush1.msra.mxu0 0.0
    %855 = vmatprep.subr.mxu0 0.0
    %856 = vmatpush1.msra.mxu0 0.0
    %857 = vmatprep.subr.mxu0 0.0
    %858 = vmatpush1.msra.mxu0 0.0
    %859 = vmatprep.subr.mxu0 0.0
    %860 = vmatpush1.msra.mxu0 0.0
    %861 = vmatprep.subr.mxu0 0.0
    %862 = vmatpush1.msra.mxu0 0.0
    %863 = vmatprep.subr.mxu0 0.0
    %864 = vmatpush1.msra.mxu0 0.0
    %865 = vmatprep.subr.mxu0 0.0
    %866 = vmatpush1.msra.mxu0 0.0
    %867 = vmatprep.subr.mxu0 0.0
    %868 = vmatpush1.msra.mxu0 0.0
    %869 = vmatprep.subr.mxu0 0.0
    %870 = vmatpush1.msra.mxu0 0.0
    %871 = vmatprep.mubr.f32.mxu0 0.0
    %v872 = vand.u32 %v499, 4294901760
    %873 = vmatmul.mubr.f32.gmra.mrb[0].mxu0 %v872
    %v874 = vpop.f32.mrb[0].mxu0
    %v875 = vadd.f32 %v801, %v874
    %v876 = vpop.f32.mrb[0].mxu0
    %877 = vdwg.mxu0
    %878 = vmatprep.subr.mxu0 0.0
    %v879 = vand.u32 %v502, 4294901760
    %880 = vmatpush1.msra.mxu0 %v879
    %881 = vmatprep.subr.mxu0 0.0
    %882 = vmatpush1.msra.mxu0 0.0
    %883 = vmatprep.subr.mxu0 0.0
    %884 = vmatpush1.msra.mxu0 0.0
    %885 = vmatprep.subr.mxu0 0.0
    %886 = vmatpush1.msra.mxu0 0.0
    %887 = vmatprep.subr.mxu0 0.0
    %888 = vmatpush1.msra.mxu0 0.0
    %889 = vmatprep.subr.mxu0 0.0
    %890 = vmatpush1.msra.mxu0 0.0
    %891 = vmatprep.subr.mxu0 0.0
    %892 = vmatpush1.msra.mxu0 0.0
    %893 = vmatprep.subr.mxu0 0.0
    %894 = vmatpush1.msra.mxu0 0.0
    %895 = vmatprep.subr.mxu0 0.0
    %896 = vmatpush1.msra.mxu0 0.0
    %897 = vmatprep.subr.mxu0 0.0
    %898 = vmatpush1.msra.mxu0 0.0
    %899 = vmatprep.subr.mxu0 0.0
    %900 = vmatpush1.msra.mxu0 0.0
    %901 = vmatprep.subr.mxu0 0.0
    %902 = vmatpush1.msra.mxu0 0.0
    %903 = vmatprep.subr.mxu0 0.0
    %904 = vmatpush1.msra.mxu0 0.0
    %905 = vmatprep.subr.mxu0 0.0
    %906 = vmatpush1.msra.mxu0 0.0
    %907 = vmatprep.subr.mxu0 0.0
    %908 = vmatpush1.msra.mxu0 0.0
    %909 = vmatprep.subr.mxu0 0.0
    %910 = vmatpush1.msra.mxu0 0.0
    %911 = vmatprep.subr.mxu0 0.0
    %912 = vmatpush1.msra.mxu0 0.0
    %913 = vmatprep.subr.mxu0 0.0
    %914 = vmatpush1.msra.mxu0 0.0
    %915 = vmatprep.subr.mxu0 0.0
    %916 = vmatpush1.msra.mxu0 0.0
    %917 = vmatprep.subr.mxu0 0.0
    %918 = vmatpush1.msra.mxu0 0.0
    %919 = vmatprep.subr.mxu0 0.0
    %920 = vmatpush1.msra.mxu0 0.0
    %921 = vmatprep.subr.mxu0 0.0
    %922 = vmatpush1.msra.mxu0 0.0
    %923 = vmatprep.subr.mxu0 0.0
    %924 = vmatpush1.msra.mxu0 0.0
    %925 = vmatprep.subr.mxu0 0.0
    %926 = vmatpush1.msra.mxu0 0.0
    %927 = vmatprep.subr.mxu0 0.0
    %928 = vmatpush1.msra.mxu0 0.0
    %929 = vmatprep.subr.mxu0 0.0
    %930 = vmatpush1.msra.mxu0 0.0
    %931 = vmatprep.subr.mxu0 0.0
    %932 = vmatpush1.msra.mxu0 0.0
    %933 = vmatprep.subr.mxu0 0.0
    %934 = vmatpush1.msra.mxu0 0.0
    %935 = vmatprep.subr.mxu0 0.0
    %936 = vmatpush1.msra.mxu0 0.0
    %937 = vmatprep.subr.mxu0 0.0
    %938 = vmatpush1.msra.mxu0 0.0
    %939 = vmatprep.subr.mxu0 0.0
    %940 = vmatpush1.msra.mxu0 0.0
    %941 = vmatprep.subr.mxu0 0.0
    %942 = vmatpush1.msra.mxu0 0.0
    %943 = vmatprep.mubr.f32.mxu0 0.0
    %v944 = vand.u32 %v499, 4294901760
    %945 = vmatmul.mubr.f32.gmra.mrb[0].mxu0 %v944
    %v946 = vpop.f32.mrb[0].mxu0
    %v947 = vadd.f32 %v875, %v946
    %v948 = vpop.f32.mrb[0].mxu0
    %949 = vdwg.mxu0
    %v950 = vld [vmem:[%s3] sm:$0x7]
    %v951 = vadd.f32 %v947, %v950
    %vm952 = vcmask 18432
    %953 = vst.msk [vmem:[#allocation7] sm:$0x7] %vm952, %v951
    // Predicated region
    $region26: #{model_forward.1} parent=1 // pred_check
      _
    $region27: #{model_forward.1} parent=1 // pred_check_branch
      %955 = sbr.rel (0) target = $region29
    $region28: #{model_forward.1} parent=1 // pred_region
      %s957 = ssub.s32 64, 64
      %958 = vsyncadd [#allocation4], %s957
      %s960 = sshll.u32 [#allocation7], 4
      %s961 = int_to_ptr.vmem [resolvable:$true] %s960
      %963 = dma.vmem_to_hbm [thread:$0]  %s961, 64, %s4, [#allocation4]
    $region29: #{model_forward.1} parent=1 // pred_fallthru
      _
    // Predicated region
    $region30: #{model_forward.1} parent=1 // pred_check
      _
    $region31: #{model_forward.1} parent=1 // pred_check_branch
      %965 = sbr.rel (0) target = $region33
    $region32: #{model_forward.1} parent=1 // pred_region
      %966 = dma.done [#allocation4], 64
    $region33: #{model_forward.1} parent=1 // pred_fallthru
      _
    %967 = vsyncpa [#allocation3], 1
    %968 = vsyncpa [#allocation6], 1
    %969 = vsyncpa [#allocation4], 1

</llo_original>
